<compile_context>
chip_gen: v5e
topology: v5e:2x2
jax: 0.10.0
libtpu: 0.0.40
codegen_flags: <defaults>
</compile_context>

<pallas_src>
import math

import jax
import jax.numpy as jnp
from jax.experimental import pallas as pl
from jax.experimental.pallas import tpu as pltpu


def _round_up(x, m):
    return (x + m - 1) // m * m


def _sublane_multiple(dtype):
    # f32 -> 8, bf16 -> 16, int8/fp8 -> 32 rows per vreg.
    return max(8, 32 // jnp.dtype(dtype).itemsize)


def _choose_tk(Hp, wbytes, budget_bytes=16 << 20):
    """Largest K-tile (multiple of 128, halving divisor of 2*Hp) whose
    double-buffered weight block stays under `budget_bytes`."""
    tk = 2 * Hp
    while (2 * tk * 4 * Hp * wbytes > budget_bytes
           and tk % 2 == 0 and (tk // 2) % 128 == 0):
        tk //= 2
    return tk


def init_params(key, num_layers, input_size, rnn_size, dtype=jnp.float32):
    """nn.LSTMCell-shaped params: U(-1/sqrt(H), 1/sqrt(H)), PyTorch gate order."""
    params = []
    k = 1.0 / math.sqrt(rnn_size)
    in_dim = input_size
    for _ in range(num_layers):
        key, k1, k2, k3, k4 = jax.random.split(key, 5)
        w_ih = jax.random.uniform(k1, (4 * rnn_size, in_dim), dtype, -k, k)
        w_hh = jax.random.uniform(k2, (4 * rnn_size, rnn_size), dtype, -k, k)
        b_ih = jax.random.uniform(k3, (4 * rnn_size,), dtype, -k, k)
        b_hh = jax.random.uniform(k4, (4 * rnn_size,), dtype, -k, k)
        params.append((w_ih, w_hh, b_ih, b_hh))
        in_dim = rnn_size
    return params


def prepare_params(params, input_size, rnn_size, compute_dtype=jnp.bfloat16):
    """One-time (hoisted) weight preparation.

    Produces:
      w_stack: [L, 2*Hp, 4*Hp] per-layer fused [W_ih ; W_hh] (transposed,
               gate-reordered i,f,g,o -> i,f,o,g, zero-padded, compute_dtype).
               Layer 0's W_ih rows are zero: the x contribution is precomputed
               in the wrapper (so input_size never inflates the kernel K dim).
      b_stack: [L, 4*Hp] fused (b_ih + b_hh), same reorder / padding, f32.
      w_ih0:   [input_size, 4*Hp] layer-0 input projection, f32 (wrapper-side).
    Zero padding keeps padded hidden lanes exactly zero through the recurrence.
    """
    H = rnn_size
    Hp = _round_up(H, 128)
    gate_order = (0, 1, 3, 2)  # PyTorch i,f,g,o  ->  kernel i,f,o,g

    def reorder_cols(w):  # [rows, 4H] -> [rows, 4*Hp]
        blocks = [jnp.pad(w[:, g * H:(g + 1) * H], ((0, 0), (0, Hp - H)))
                  for g in gate_order]
        return jnp.concatenate(blocks, axis=1)

    def reorder_bias(b):  # [4H] -> [4*Hp]
        return jnp.concatenate(
            [jnp.pad(b[g * H:(g + 1) * H], (0, Hp - H)) for g in gate_order])

    w_list, b_list = [], []
    for l, (w_ih, w_hh, b_ih, b_hh) in enumerate(params):
        w = jnp.zeros((2 * Hp, 4 * Hp), jnp.float32)
        if l > 0:
            w = w.at[:H, :].set(reorder_cols(jnp.transpose(w_ih).astype(jnp.float32)))
        w = w.at[Hp:Hp + H, :].set(reorder_cols(jnp.transpose(w_hh).astype(jnp.float32)))
        w_list.append(w.astype(compute_dtype))
        b_list.append(reorder_bias((b_ih + b_hh).astype(jnp.float32)))

    w_ih0 = reorder_cols(jnp.transpose(params[0][0]).astype(jnp.float32))

    return dict(
        w_stack=jnp.stack(w_list),        # [L, 2*Hp, 4*Hp] compute_dtype
        b_stack=jnp.stack(b_list),        # [L, 4*Hp] f32
        w_ih0=w_ih0,                      # [input_size, 4*Hp] f32
        num_layers=len(params), input_size=input_size, rnn_size=rnn_size,
        Hp=Hp, compute_dtype=jnp.dtype(compute_dtype))


def stacked_lstm_cell(x, h_c, prepared, dropout=0.0):
    """Mirror of StackedLSTMCell.forward.

    x: [B, input_size]; h_c: [2, L, B, H] (stacked (h_0, c_0)).
    Returns ((last_h, last_c), (h_stack, c_stack)).
    """
    # TODO(synk): training-mode dropout (p > 0) between layers is not
    # implemented in-kernel; nn.Dropout with p=0.0 / eval mode is identity.
    w_stack = prepared["w_stack"]
    L, H, Hp = prepared["num_layers"], prepared["rnn_size"], prepared["Hp"]
    cdt = prepared["compute_dtype"]

    B, _ = x.shape
    out_dt = x.dtype
    Bp = _round_up(B, max(_sublane_multiple(out_dt), _sublane_multiple(cdt)))

    cbytes = jnp.dtype(cdt).itemsize
    obytes = jnp.dtype(out_dt).itemsize
    tk = _choose_tk(Hp, cbytes)
    NK = (2 * Hp) // tk

    # Layer-0 input projection + all biases, precomputed in f32 and folded into
    # one additive term per layer (removes the bias broadcast-add and the
    # zero weight rows that input_size would otherwise inject into every layer).
    z0 = jnp.dot(x.astype(jnp.float32), prepared["w_ih0"]) + prepared["b_stack"][0]
    add = jnp.zeros((L, Bp, 4 * Hp), jnp.float32)
    if L > 1:
        add = add.at[1:, :B, :].set(
            jnp.broadcast_to(prepared["b_stack"][1:, None, :], (L - 1, B, 4 * Hp)))
    add = add.at[0, :B, :].set(z0)

    # Lane/sublane-aligned, zero-padded states. h feeds only the MXU -> cdt;
    # c feeds the f32 elementwise recurrence -> f32.
    h0 = jnp.zeros((L, Bp, Hp), cdt).at[:, :B, :H].set(h_c[0].astype(cdt))
    c0 = jnp.zeros((L, Bp, Hp), jnp.float32).at[:, :B, :H].set(
        h_c[1].astype(jnp.float32))

    def kernel(h0_ref, c0_ref, w_ref, add_ref, h_out_ref, c_out_ref,
               xh_scr, acc_scr):
        layer = pl.program_id(0)
        k = pl.program_id(1)
        nk = pl.num_programs(1)

        @pl.when((layer == 0) & (k == 0))
        def _():
            # Layer 0's x contribution lives in `add`, and its x-rows of W are
            # zero — but uninitialized VMEM may hold NaNs (NaN * 0 = NaN), so
            # zero the x-half of the operand exactly once.
            xh_scr[:, :Hp] = jnp.zeros((Bp, Hp), xh_scr.dtype)

        @pl.when(k == 0)
        def _():
            xh_scr[:, Hp:] = h0_ref[0]          # recurrent h for this layer
            acc_scr[...] = add_ref[0]           # bias (+ layer-0 x @ W_ih)

        # K-tiled fused matmul: gates += [x|h][:, k-tile] @ W[k-tile].
        start = pl.multiple_of(k * tk, 128)
        acc_scr[...] += jnp.dot(xh_scr[:, pl.ds(start, tk)], w_ref[0],
                                preferred_element_type=jnp.float32)

        @pl.when(k == nk - 1)
        def _():
            gates = acc_scr[...]                      # (Bp, 4*Hp) f32
            # Gate layout [i | f | o | g]: one contiguous sigmoid + one tanh;
            # all slice boundaries are multiples of 128 lanes.
            sig = jax.nn.sigmoid(gates[:, :3 * Hp])
            g_g = jnp.tanh(gates[:, 3 * Hp:])
            i_g = sig[:, :Hp]
            f_g = sig[:, Hp:2 * Hp]
            o_g = sig[:, 2 * Hp:]

            c_new = f_g * c0_ref[0].astype(jnp.float32) + i_g * g_g
            h_new = o_g * jnp.tanh(c_new)

            h_out_ref[0] = h_new.astype(h_out_ref.dtype)
            c_out_ref[0] = c_new.astype(c_out_ref.dtype)
            # This layer's h becomes the next layer's "x" — stays in VMEM.
            xh_scr[:, :Hp] = h_new.astype(xh_scr.dtype)

    # Explicit scoped-VMEM sizing (defaults: 16 MiB v5e / 32 MiB v6e,v7x).
    vmem_need = (2 * tk * 4 * Hp * cbytes        # weight double buffer
                 + 2 * Bp * 4 * Hp * 4           # add double buffer (f32)
                 + 2 * Bp * Hp * cbytes          # h0 double buffer
                 + 2 * Bp * Hp * 4               # c0 double buffer (f32)
                 + 2 * 2 * Bp * Hp * obytes      # h_out + c_out double buffers
                 + Bp * 2 * Hp * cbytes          # xh scratch
                 + Bp * 4 * Hp * 4)              # gate accumulator scratch
    vmem_limit = int(min(max(2 * vmem_need, 8 << 20), 64 << 20))
    vmem_limit = int(max(vmem_limit, vmem_need + (1 << 20)))

    flops = 2 * Bp * (2 * Hp) * (4 * Hp) * L
    transcendentals = 5 * Bp * Hp * L            # 3 sigmoid + 2 tanh per unit
    bytes_accessed = (w_stack.size * w_stack.dtype.itemsize
                      + add.size * 4 + h0.size * cbytes + c0.size * 4
                      + 2 * L * Bp * Hp * obytes)

    h_out, c_out = pl.pallas_call(
        kernel,
        out_shape=(jax.ShapeDtypeStruct((L, Bp, Hp), out_dt),
                   jax.ShapeDtypeStruct((L, Bp, Hp), out_dt)),
        grid_spec=pltpu.PrefetchScalarGridSpec(
            num_scalar_prefetch=0,
            grid=(L, NK),
            in_specs=[
                pl.BlockSpec((1, Bp, Hp), lambda l, k: (l, 0, 0)),        # h_0[l]
                pl.BlockSpec((1, Bp, Hp), lambda l, k: (l, 0, 0)),        # c_0[l]
                pl.BlockSpec((1, tk, 4 * Hp), lambda l, k: (l, k, 0)),    # W[l], k-tile
                pl.BlockSpec((1, Bp, 4 * Hp), lambda l, k: (l, 0, 0)),    # add[l]
            ],
            out_specs=(pl.BlockSpec((1, Bp, Hp), lambda l, k: (l, 0, 0)),
                       pl.BlockSpec((1, Bp, Hp), lambda l, k: (l, 0, 0))),
            scratch_shapes=[pltpu.VMEM((Bp, 2 * Hp), cdt),
                            pltpu.VMEM((Bp, 4 * Hp), jnp.float32)],
        ),
        compiler_params=pltpu.CompilerParams(
            dimension_semantics=("arbitrary", "arbitrary"),
            vmem_limit_bytes=vmem_limit),
        cost_estimate=pl.CostEstimate(flops=flops,
                                      transcendentals=transcendentals,
                                      bytes_accessed=bytes_accessed),
    )(h0, c0, w_stack, add)

    h_stack = h_out[:, :B, :H].astype(out_dt)
    c_stack = c_out[:, :B, :H].astype(out_dt)
    return (h_stack[-1], c_stack[-1]), (h_stack, c_stack)


def _reference(x, h_c, params):
    """Pure-JAX reference (PyTorch semantics) for correctness checking."""
    h_0, c_0 = h_c[0], h_c[1]
    h_list, c_list = [], []
    for i, (w_ih, w_hh, b_ih, b_hh) in enumerate(params):
        gates = x @ w_ih.T + b_ih + h_0[i] @ w_hh.T + b_hh
        H = h_0[i].shape[1]
        i_g = jax.nn.sigmoid(gates[:, 0 * H:1 * H])
        f_g = jax.nn.sigmoid(gates[:, 1 * H:2 * H])
        g_g = jnp.tanh(gates[:, 2 * H:3 * H])
        o_g = jax.nn.sigmoid(gates[:, 3 * H:4 * H])
        c_i = f_g * c_0[i] + i_g * g_g
        h_i = o_g * jnp.tanh(c_i)
        x = h_i
        h_list.append(h_i)
        c_list.append(c_i)
    return (h_list[-1], c_list[-1]), (jnp.stack(h_list), jnp.stack(c_list))


if __name__ == "__main__":
    num_layers = 2
    input_size = 16
    rnn_size = 32
    batch = 2

    key = jax.random.PRNGKey(0)
    kx, kh, kc, kp = jax.random.split(key, 4)

    x = jax.random.normal(kx, (batch, input_size), jnp.float32)
    h0 = jax.random.normal(kh, (num_layers, batch, rnn_size), jnp.float32)
    c0 = jax.random.normal(kc, (num_layers, batch, rnn_size), jnp.float32)
    h_c = jnp.stack([h0, c0])  # [2, num_layers, B, H]

    params = init_params(kp, num_layers, input_size, rnn_size)
    (r_last_h, r_last_c), (r_h, r_c) = _reference(x, h_c, params)

    # Performance path: bf16 MXU operands, f32 elementwise tail.
    prep_bf16 = prepare_params(params, input_size, rnn_size, jnp.bfloat16)
    fwd = jax.jit(lambda xx, hc: stacked_lstm_cell(xx, hc, prep_bf16))
    (last_h, last_c), (h_stack, c_stack) = fwd(x, h_c)
    jax.block_until_ready((last_h, last_c, h_stack, c_stack))

    assert h_stack.shape == (num_layers, batch, rnn_size)
    assert c_stack.shape == (num_layers, batch, rnn_size)
    assert jnp.allclose(h_stack, r_h, atol=3e-2, rtol=3e-2)
    assert jnp.allclose(c_stack, r_c, atol=3e-2, rtol=3e-2)
    assert jnp.allclose(last_h, r_last_h, atol=3e-2, rtol=3e-2)
    assert jnp.allclose(last_c, r_last_c, atol=3e-2, rtol=3e-2)

    # Strict numerics check of the kernel structure: f32 compute path.
    prep_f32 = prepare_params(params, input_size, rnn_size, jnp.float32)
    (lh32, lc32), (h32, c32) = stacked_lstm_cell(x, h_c, prep_f32)
    jax.block_until_ready((lh32, lc32, h32, c32))
    assert jnp.allclose(h32, r_h, atol=1e-5, rtol=1e-5)
    assert jnp.allclose(c32, r_c, atol=1e-5, rtol=1e-5)
    assert jnp.allclose(lh32, r_last_h, atol=1e-5, rtol=1e-5)
    assert jnp.allclose(lc32, r_last_c, atol=1e-5, rtol=1e-5)

    print("KERNEL_OK")
</pallas_src>

<mosaic_0001>
module attributes {stable_mosaic.version = 11 : i64} {
  func.func @kernel(%arg0: i32, %arg1: i32, %arg2: memref<1x16x128xbf16, #tpu.memory_space<vmem>>, %arg3: memref<1x16x128xf32, #tpu.memory_space<vmem>>, %arg4: memref<1x256x512xbf16, #tpu.memory_space<vmem>>, %arg5: memref<1x16x512xf32, #tpu.memory_space<vmem>>, %arg6: memref<1x16x128xf32, #tpu.memory_space<vmem>>, %arg7: memref<1x16x128xf32, #tpu.memory_space<vmem>>, %arg8: memref<16x256xbf16, #tpu.memory_space<vmem>>, %arg9: memref<16x512xf32, #tpu.memory_space<vmem>>) attributes {dimension_semantics = [#tpu.dimension_semantics<arbitrary>, #tpu.dimension_semantics<arbitrary>], iteration_bounds = array<i64: 2, 1>, scalar_prefetch = 0 : i64, scratch_operands = 2 : i64, tpu.core_type = #tpu.core_type<tc>, window_params = [{transform_indices = @transform_0, window_bounds = array<i64: 1, 16, 128>}, {transform_indices = @transform_1, window_bounds = array<i64: 1, 16, 128>}, {transform_indices = @transform_2, window_bounds = array<i64: 1, 256, 512>}, {transform_indices = @transform_3, window_bounds = array<i64: 1, 16, 512>}, {transform_indices = @transform_4, window_bounds = array<i64: 1, 16, 128>}, {transform_indices = @transform_5, window_bounds = array<i64: 1, 16, 128>}]} {
    %c0_i32 = arith.constant 0 : i32
    %0 = arith.cmpi eq, %arg0, %c0_i32 : i32
    %c0_i32_0 = arith.constant 0 : i32
    %1 = arith.cmpi eq, %arg1, %c0_i32_0 : i32
    %2 = arith.andi %0, %1 : i1
    %3 = arith.extui %2 : i1 to i32
    %c0_i32_1 = arith.constant 0 : i32
    %4 = arith.cmpi ne, %3, %c0_i32_1 : i32
    scf.if %4 {
      %cst_13 = arith.constant 0.000000e+00 : bf16
      %21 = vector.broadcast %cst_13 : bf16 to vector<16x128xbf16>
      %c0_14 = arith.constant 0 : index
      %c0_15 = arith.constant 0 : index
      %22 = vector.load %arg8[%c0_14, %c0_15] : memref<16x256xbf16, #tpu.memory_space<vmem>>, vector<16x128xbf16>
      tpu.vector_store %arg8[%c0_14, %c0_15], %21 {strides = array<i32>} : memref<16x256xbf16, #tpu.memory_space<vmem>>, vector<16x128xbf16>,
    } else {
    }
    %c0_i32_2 = arith.constant 0 : i32
    %5 = arith.cmpi eq, %arg1, %c0_i32_2 : i32
    %6 = arith.extui %5 : i1 to i32
    %c0_i32_3 = arith.constant 0 : i32
    %7 = arith.cmpi ne, %6, %c0_i32_3 : i32
    scf.if %7 {
      %c0_13 = arith.constant 0 : index
      %c0_14 = arith.constant 0 : index
      %c0_15 = arith.constant 0 : index
      %21 = vector.load %arg2[%c0_13, %c0_14, %c0_15] : memref<1x16x128xbf16, #tpu.memory_space<vmem>>, vector<1x16x128xbf16>
      %22 = vector.shape_cast %21 : vector<1x16x128xbf16> to vector<16x128xbf16>
      %c0_16 = arith.constant 0 : index
      %c128 = arith.constant 128 : index
      %23 = vector.load %arg8[%c0_16, %c128] : memref<16x256xbf16, #tpu.memory_space<vmem>>, vector<16x128xbf16>
      tpu.vector_store %arg8[%c0_16, %c128], %22 {strides = array<i32>} : memref<16x256xbf16, #tpu.memory_space<vmem>>, vector<16x128xbf16>,
      %c0_17 = arith.constant 0 : index
      %c0_18 = arith.constant 0 : index
      %c0_19 = arith.constant 0 : index
      %24 = vector.load %arg5[%c0_17, %c0_18, %c0_19] : memref<1x16x512xf32, #tpu.memory_space<vmem>>, vector<1x16x512xf32>
      %25 = vector.shape_cast %24 : vector<1x16x512xf32> to vector<16x512xf32>
      %c0_20 = arith.constant 0 : index
      %c0_21 = arith.constant 0 : index
      %26 = vector.load %arg9[%c0_20, %c0_21] : memref<16x512xf32, #tpu.memory_space<vmem>>, vector<16x512xf32>
      tpu.vector_store %arg9[%c0_20, %c0_21], %25 {strides = array<i32>} : memref<16x512xf32, #tpu.memory_space<vmem>>, vector<16x512xf32>,
    } else {
    }
    %c256_i32 = arith.constant 256 : i32
    %8 = arith.muli %arg1, %c256_i32 : i32
    %9 = tpu.assume_multiple %8, 128 : i32
    %c0 = arith.constant 0 : index
    %c0_4 = arith.constant 0 : index
    %10 = vector.load %arg9[%c0, %c0_4] : memref<16x512xf32, #tpu.memory_space<vmem>>, vector<16x512xf32>
    %c0_5 = arith.constant 0 : index
    %11 = arith.index_cast %9 : i32 to index
    %12 = vector.load %arg8[%c0_5, %11] : memref<16x256xbf16, #tpu.memory_space<vmem>>, vector<16x256xbf16>
    %c0_6 = arith.constant 0 : index
    %c0_7 = arith.constant 0 : index
    %c0_8 = arith.constant 0 : index
    %13 = vector.load %arg4[%c0_6, %c0_7, %c0_8] : memref<1x256x512xbf16, #tpu.memory_space<vmem>>, vector<1x256x512xbf16>
    %14 = vector.shape_cast %13 : vector<1x256x512xbf16> to vector<256x512xbf16>
    %cst = arith.constant dense<0.000000e+00> : vector<16x512xf32>
    %15 = tpu.matmul %12, %14, %cst {dimension_numbers = #tpu.dot_dimension_numbers<[1], [0], [0], [1], [0, 0, 1, 1], [], []>} : vector<16x256xbf16>, vector<256x512xbf16>, vector<16x512xf32> -> vector<16x512xf32>
    %16 = arith.addf %10, %15 : vector<16x512xf32>
    %c0_9 = arith.constant 0 : index
    %c0_10 = arith.constant 0 : index
    %17 = vector.load %arg9[%c0_9, %c0_10] : memref<16x512xf32, #tpu.memory_space<vmem>>, vector<16x512xf32>
    tpu.vector_store %arg9[%c0_9, %c0_10], %16 {strides = array<i32>} : memref<16x512xf32, #tpu.memory_space<vmem>>, vector<16x512xf32>,
    %c0_i32_11 = arith.constant 0 : i32
    %18 = arith.cmpi eq, %arg1, %c0_i32_11 : i32
    %19 = arith.extui %18 : i1 to i32
    %c0_i32_12 = arith.constant 0 : i32
    %20 = arith.cmpi ne, %19, %c0_i32_12 : i32
    scf.if %20 {
      %c0_13 = arith.constant 0 : index
      %c0_14 = arith.constant 0 : index
      %21 = vector.load %arg9[%c0_13, %c0_14] : memref<16x512xf32, #tpu.memory_space<vmem>>, vector<16x512xf32>
      %22 = vector.extract_strided_slice %21 {offsets = [0, 0], sizes = [16, 384], strides = [1, 1]} : vector<16x512xf32> to vector<16x384xf32>
      %23 = arith.negf %22 : vector<16x384xf32>
      %24 = math.exp %23 : vector<16x384xf32>
      %cst_15 = arith.constant 1.000000e+00 : f32
      %25 = vector.broadcast %cst_15 : f32 to vector<16x384xf32>
      %26 = arith.addf %25, %24 : vector<16x384xf32>
      %27 = arith.divf %25, %26 : vector<16x384xf32>
      %28 = vector.extract_strided_slice %21 {offsets = [0, 384], sizes = [16, 128], strides = [1, 1]} : vector<16x512xf32> to vector<16x128xf32>
      %29 = math.tanh %28 : vector<16x128xf32>
      %30 = vector.extract_strided_slice %27 {offsets = [0, 0], sizes = [16, 128], strides = [1, 1]} : vector<16x384xf32> to vector<16x128xf32>
      %31 = vector.extract_strided_slice %27 {offsets = [0, 128], sizes = [16, 128], strides = [1, 1]} : vector<16x384xf32> to vector<16x128xf32>
      %32 = vector.extract_strided_slice %27 {offsets = [0, 256], sizes = [16, 128], strides = [1, 1]} : vector<16x384xf32> to vector<16x128xf32>
      %c0_16 = arith.constant 0 : index
      %c0_17 = arith.constant 0 : index
      %c0_18 = arith.constant 0 : index
      %33 = vector.load %arg3[%c0_16, %c0_17, %c0_18] : memref<1x16x128xf32, #tpu.memory_space<vmem>>, vector<1x16x128xf32>
      %34 = vector.shape_cast %33 : vector<1x16x128xf32> to vector<16x128xf32>
      %35 = arith.mulf %31, %34 : vector<16x128xf32>
      %36 = arith.mulf %30, %29 : vector<16x128xf32>
      %37 = arith.addf %35, %36 : vector<16x128xf32>
      %38 = math.tanh %37 : vector<16x128xf32>
      %39 = arith.mulf %32, %38 : vector<16x128xf32>
      %c0_19 = arith.constant 0 : index
      %c0_20 = arith.constant 0 : index
      %c0_21 = arith.constant 0 : index
      %40 = vector.load %arg6[%c0_19, %c0_20, %c0_21] : memref<1x16x128xf32, #tpu.memory_space<vmem>>, vector<1x16x128xf32>
      %41 = vector.shape_cast %40 : vector<1x16x128xf32> to vector<16x128xf32>
      %42 = vector.shape_cast %39 : vector<16x128xf32> to vector<1x16x128xf32>
      tpu.vector_store %arg6[%c0_19, %c0_20, %c0_21], %42 {strides = array<i32>} : memref<1x16x128xf32, #tpu.memory_space<vmem>>, vector<1x16x128xf32>,
      %c0_22 = arith.constant 0 : index
      %c0_23 = arith.constant 0 : index
      %c0_24 = arith.constant 0 : index
      %43 = vector.load %arg7[%c0_22, %c0_23, %c0_24] : memref<1x16x128xf32, #tpu.memory_space<vmem>>, vector<1x16x128xf32>
      %44 = vector.shape_cast %43 : vector<1x16x128xf32> to vector<16x128xf32>
      %45 = vector.shape_cast %37 : vector<16x128xf32> to vector<1x16x128xf32>
      tpu.vector_store %arg7[%c0_22, %c0_23, %c0_24], %45 {strides = array<i32>} : memref<1x16x128xf32, #tpu.memory_space<vmem>>, vector<1x16x128xf32>,
      %46 = arith.truncf %39 : vector<16x128xf32> to vector<16x128xbf16>
      %c0_25 = arith.constant 0 : index
      %c0_26 = arith.constant 0 : index
      %47 = vector.load %arg8[%c0_25, %c0_26] : memref<16x256xbf16, #tpu.memory_space<vmem>>, vector<16x128xbf16>
      tpu.vector_store %arg8[%c0_25, %c0_26], %46 {strides = array<i32>} : memref<16x256xbf16, #tpu.memory_space<vmem>>, vector<16x128xbf16>,
    } else {
    }
    return
  }
  func.func @transform_0(%arg0: i32, %arg1: i32) -> (i32, i32, i32) {
    %c0_i32 = arith.constant 0 : i32
    %c0_i32_0 = arith.constant 0 : i32
    %c0_i32_1 = arith.constant 0 : i32
    return %arg0, %c0_i32, %c0_i32_0 : i32, i32, i32
  }
  func.func @transform_1(%arg0: i32, %arg1: i32) -> (i32, i32, i32) {
    %c0_i32 = arith.constant 0 : i32
    %c0_i32_0 = arith.constant 0 : i32
    %c0_i32_1 = arith.constant 0 : i32
    return %arg0, %c0_i32, %c0_i32_0 : i32, i32, i32
  }
  func.func @transform_2(%arg0: i32, %arg1: i32) -> (i32, i32, i32) {
    %c0_i32 = arith.constant 0 : i32
    %c0_i32_0 = arith.constant 0 : i32
    return %arg0, %arg1, %c0_i32 : i32, i32, i32
  }
  func.func @transform_3(%arg0: i32, %arg1: i32) -> (i32, i32, i32) {
    %c0_i32 = arith.constant 0 : i32
    %c0_i32_0 = arith.constant 0 : i32
    %c0_i32_1 = arith.constant 0 : i32
    return %arg0, %c0_i32, %c0_i32_0 : i32, i32, i32
  }
  func.func @transform_4(%arg0: i32, %arg1: i32) -> (i32, i32, i32) {
    %c0_i32 = arith.constant 0 : i32
    %c0_i32_0 = arith.constant 0 : i32
    %c0_i32_1 = arith.constant 0 : i32
    return %arg0, %c0_i32, %c0_i32_0 : i32, i32, i32
  }
  func.func @transform_5(%arg0: i32, %arg1: i32) -> (i32, i32, i32) {
    %c0_i32 = arith.constant 0 : i32
    %c0_i32_0 = arith.constant 0 : i32
    %c0_i32_1 = arith.constant 0 : i32
    return %arg0, %c0_i32, %c0_i32_0 : i32, i32, i32
  }
}

</mosaic_0001>

<llo_original>
// kernel: _lambda_.1
$region0: #{_lambda_.1}
  #allocation0 [shape = 'u32[]', space=smem, size = 0x4, offset = 0x4, fixed_abs, tag = 'smem constant byte address 0x4 - core index']
  #allocation1 [shape = 'u32[72,128]{1,0:T(1,128)}', space=vmem, size = 0x9000, scoped, tag = 'internal scratch']
  #allocation2 [shape = 'bf16[16,256]{1,0:T(8,128)(2,1)}', space=vmem, size = 0x2000, scoped, tag = 'scratch operand']
  #allocation3 [shape = 'f32[16,512]{1,0:T(8,128)}', space=vmem, size = 0x8000, scoped, tag = 'scratch operand']
  %s0 = inlined_call_operand.vmem [shape: bf16[2,16,128], index: 0, kind: input, shape index: {}]
  %s1 = inlined_call_operand.vmem [shape: f32[2,16,128], index: 1, kind: input, shape index: {}]
  %s2 = inlined_call_operand.hbm [shape: bf16[2,256,512], index: 2, kind: input, shape index: {}]
  %s3 = inlined_call_operand.vmem [shape: f32[2,16,512], index: 3, kind: input, shape index: {}]
  %s4 = inlined_call_operand.vmem [shape: f32[2,16,128], index: 4, kind: output, shape index: {0}]
  %s5 = inlined_call_operand.vmem [shape: f32[2,16,128], index: 5, kind: output, shape index: {1}]
  %6 = xla_tuple %s4, %s5
  %s7 = sld [smem:[#allocation0]]
  $region73: #{_lambda_.1} parent=0
    _
  %s9 = ssub.s32 1, %s7
  %s10 = scalar_select 0, %s9, %s7
  $region1: #{_lambda_.1} parent=0
    #allocation4 [shape = 'u8[524288]{0}', space=vmem, size = 0x80000, scoped, tag = 'input window, operand 2']
    #allocation5 [shape = 's32[2]{0}', space=sflag, size = 0x8, scoped, tag = 'scoped memory for _lambda_.1']
    %11 = vsyncpa [#allocation5], 0
    %s12 = scalar_lea.sflag [#allocation5], 1
    %13 = vsyncpa %s12, 0
    loop: start=0, step=1, limit=4
    $region2: #{_lambda_.1} parent=1 // loop_pre_header
      _
    $region3: #{_lambda_.1} parent=1 // loop_header
      %s15 = sphi 0, %s19
      %p16 = scmp.ge.s32.totalorder %s15, 4
      %s22 = sphi 0, %s34
      %s23 = sphi 0, %s30
      %s24 = sphi 0, %s22
      %s25 = sphi 0, %s23
      %s26 = sphi 0, %s24
      %s27 = sphi 0, %s25
      %s37 = sphi 0, %s39
      %s40 = sphi 0, %s37
      %s41 = sphi 0, %s40
      %s57 = sphi 0, %s41
      %s63 = sphi 0, %s65
      %s66 = sphi 0, %s63
      %s67 = sphi 0, %s66
      %s83 = sphi 0, %s67
      %s91 = sphi 0, %s93
      %s94 = sphi 0, %s91
      %s95 = sphi 0, %s94
      %s111 = sphi 0, %s95
      %s117 = sphi 0, %s119
      %s120 = sphi 0, %s117
      %s121 = sphi 0, %s120
      %s137 = sphi 0, %s121
      %s143 = sphi 0, %s145
      %s146 = sphi 0, %s143
      %s147 = sphi 0, %s146
      %s163 = sphi 0, %s147
      %s169 = sphi 0, %s171
      %s172 = sphi 0, %s169
      %s173 = sphi 0, %s172
      %s189 = sphi 0, %s173
    $region4: #{_lambda_.1} parent=1 // loop_header_branch
      %18 = sbr.rel (%p16) target = $region8
    $region5: #{_lambda_.1} parent=1 // loop_body
      %s20 = ssub.s32 %s15, 1
      %s21 = ssub.s32 %s15, 2
      %s28 = sadd.s32 1, %s23
      %p29 = scmp.ge.s32.totalorder %s28, 1
      %s30 = scalar_select %p29, 0, %s28
      %s31 = sadd.s32 1, %s22
      %s32 = scalar_select %p29, %s31, %s22
      %p33 = scmp.ge.s32.totalorder %s32, 2
      %s34 = scalar_select %p33, 0, %s32
      %s35 = ssub.s32 %s22, %s34
      %p36 = scmp.eq.s32.totalorder %s35, 0
      %s38 = sadd.s32 %s37, 1
      %s39 = scalar_select %p36, %s37, %s38
      %p42 = pneg %p36
      %p43 = scmp.eq.s32.totalorder %s15, 1
      %p44 = por %p42, %p43
      %p45 = scmp.ne.s32.totalorder %s37, %s40
      %p46 = scmp.eq.s32.totalorder %s15, 0
      %p47 = por %p45, %p46
      %p48 = scmp.ne.s32.totalorder %s37, %s40
      %p49 = scmp.eq.s32.totalorder %s20, 1
      %p50 = por %p48, %p49
      %p51 = scmp.ne.s32.totalorder %s40, %s41
      %p52 = scmp.eq.s32.totalorder %s20, 0
      %p53 = por %p51, %p52
      %p54 = scmp.ne.s32.totalorder %s40, %s41
      %p55 = scmp.eq.s32.totalorder %s21, 1
      %p56 = por %p54, %p55
      %p58 = scmp.ne.s32.totalorder %s41, %s57
      %p59 = scmp.eq.s32.totalorder %s21, 0
      %p60 = por %p58, %p59
      %s61 = ssub.s32 %s22, %s34
      %p62 = scmp.eq.s32.totalorder %s61, 0
      %s64 = sadd.s32 %s63, 1
      %s65 = scalar_select %p62, %s63, %s64
      %p68 = pneg %p62
      %p69 = scmp.eq.s32.totalorder %s15, 1
      %p70 = por %p68, %p69
      %p71 = scmp.ne.s32.totalorder %s63, %s66
      %p72 = scmp.eq.s32.totalorder %s15, 0
      %p73 = por %p71, %p72
      %p74 = scmp.ne.s32.totalorder %s63, %s66
      %p75 = scmp.eq.s32.totalorder %s20, 1
      %p76 = por %p74, %p75
      %p77 = scmp.ne.s32.totalorder %s66, %s67
      %p78 = scmp.eq.s32.totalorder %s20, 0
      %p79 = por %p77, %p78
      %p80 = scmp.ne.s32.totalorder %s66, %s67
      %p81 = scmp.eq.s32.totalorder %s21, 1
      %p82 = por %p80, %p81
      %p84 = scmp.ne.s32.totalorder %s67, %s83
      %p85 = scmp.eq.s32.totalorder %s21, 0
      %p86 = por %p84, %p85
      %s87 = ssub.s32 %s22, %s34
      %s88 = ssub.s32 %s23, %s30
      %s89 = sor.u32 %s87, %s88
      %p90 = scmp.eq.s32.totalorder %s89, 0
      %s92 = sadd.s32 %s91, 1
      %s93 = scalar_select %p90, %s91, %s92
      %p96 = pneg %p90
      %p97 = scmp.eq.s32.totalorder %s15, 1
      %p98 = por %p96, %p97
      %p99 = scmp.ne.s32.totalorder %s91, %s94
      %p100 = scmp.eq.s32.totalorder %s15, 0
      %p101 = por %p99, %p100
      %p102 = scmp.ne.s32.totalorder %s91, %s94
      %p103 = scmp.eq.s32.totalorder %s20, 1
      %p104 = por %p102, %p103
      %p105 = scmp.ne.s32.totalorder %s94, %s95
      %p106 = scmp.eq.s32.totalorder %s20, 0
      %p107 = por %p105, %p106
      %p108 = scmp.ne.s32.totalorder %s94, %s95
      %p109 = scmp.eq.s32.totalorder %s21, 1
      %p110 = por %p108, %p109
      %p112 = scmp.ne.s32.totalorder %s95, %s111
      %p113 = scmp.eq.s32.totalorder %s21, 0
      %p114 = por %p112, %p113
      %s115 = ssub.s32 %s22, %s34
      %p116 = scmp.eq.s32.totalorder %s115, 0
      %s118 = sadd.s32 %s117, 1
      %s119 = scalar_select %p116, %s117, %s118
      %p122 = pneg %p116
      %p123 = scmp.eq.s32.totalorder %s15, 1
      %p124 = por %p122, %p123
      %p125 = scmp.ne.s32.totalorder %s117, %s120
      %p126 = scmp.eq.s32.totalorder %s15, 0
      %p127 = por %p125, %p126
      %p128 = scmp.ne.s32.totalorder %s117, %s120
      %p129 = scmp.eq.s32.totalorder %s20, 1
      %p130 = por %p128, %p129
      %p131 = scmp.ne.s32.totalorder %s120, %s121
      %p132 = scmp.eq.s32.totalorder %s20, 0
      %p133 = por %p131, %p132
      %p134 = scmp.ne.s32.totalorder %s120, %s121
      %p135 = scmp.eq.s32.totalorder %s21, 1
      %p136 = por %p134, %p135
      %p138 = scmp.ne.s32.totalorder %s121, %s137
      %p139 = scmp.eq.s32.totalorder %s21, 0
      %p140 = por %p138, %p139
      %s141 = ssub.s32 %s22, %s34
      %p142 = scmp.eq.s32.totalorder %s141, 0
      %s144 = sadd.s32 %s143, 1
      %s145 = scalar_select %p142, %s143, %s144
      %p148 = pneg %p142
      %p149 = scmp.eq.s32.totalorder %s15, 1
      %p150 = por %p148, %p149
      %p151 = scmp.ne.s32.totalorder %s143, %s146
      %p152 = scmp.eq.s32.totalorder %s15, 0
      %p153 = por %p151, %p152
      %p154 = scmp.ne.s32.totalorder %s143, %s146
      %p155 = scmp.eq.s32.totalorder %s20, 1
      %p156 = por %p154, %p155
      %p157 = scmp.ne.s32.totalorder %s146, %s147
      %p158 = scmp.eq.s32.totalorder %s20, 0
      %p159 = por %p157, %p158
      %p160 = scmp.ne.s32.totalorder %s146, %s147
      %p161 = scmp.eq.s32.totalorder %s21, 1
      %p162 = por %p160, %p161
      %p164 = scmp.ne.s32.totalorder %s147, %s163
      %p165 = scmp.eq.s32.totalorder %s21, 0
      %p166 = por %p164, %p165
      %s167 = ssub.s32 %s22, %s34
      %p168 = scmp.eq.s32.totalorder %s167, 0
      %s170 = sadd.s32 %s169, 1
      %s171 = scalar_select %p168, %s169, %s170
      %p174 = pneg %p168
      %p175 = scmp.eq.s32.totalorder %s15, 1
      %p176 = por %p174, %p175
      %p177 = scmp.ne.s32.totalorder %s169, %s172
      %p178 = scmp.eq.s32.totalorder %s15, 0
      %p179 = por %p177, %p178
      %p180 = scmp.ne.s32.totalorder %s169, %s172
      %p181 = scmp.eq.s32.totalorder %s20, 1
      %p182 = por %p180, %p181
      %p183 = scmp.ne.s32.totalorder %s172, %s173
      %p184 = scmp.eq.s32.totalorder %s20, 0
      %p185 = por %p183, %p184
      %p186 = scmp.ne.s32.totalorder %s172, %s173
      %p187 = scmp.eq.s32.totalorder %s21, 1
      %p188 = por %p186, %p187
      %p190 = scmp.ne.s32.totalorder %s173, %s189
      %p191 = scmp.eq.s32.totalorder %s21, 0
      %p192 = por %p190, %p191
      %p193 = scmp.le.s32.totalorder 1, %s15
      %p194 = scmp.lt.s32.totalorder %s15, 3
      %p195 = pnand %p193, %p194
      %p196 = pneg %p195
      // Predicated region
      $region9: #{_lambda_.1} parent=5 // pred_check
        _
      $region10: #{_lambda_.1} parent=5 // pred_check_branch
        %198 = sbr.rel (%p195) target = $region12
      $region11: #{_lambda_.1} parent=5 // pred_region
        %s199 = ssub.s32 %s15, 1
      $region12: #{_lambda_.1} parent=5 // pred_fallthru
        _
      %p200 = scmp.lt.s32.totalorder %s15, 2
      // Predicated region
      $region13: #{_lambda_.1} parent=5 // pred_check
        %p201 = pneg %p200
      $region14: #{_lambda_.1} parent=5 // pred_check_branch
        %203 = sbr.rel (%p201) target = $region16
      $region15: #{_lambda_.1} parent=5 // pred_region
        // Predicated region
        $region17: #{_lambda_.1} parent=15 // pred_check
          %p204 = pneg %p47
        $region18: #{_lambda_.1} parent=15 // pred_check_branch
          %206 = sbr.rel (%p204) target = $region20
        $region19: #{_lambda_.1} parent=15 // pred_region
          %p207 = scmp.lt.s32.totalorder %s22, 1
          %s208 = scalar_select %p207, %s22, 1
          %s209 = smul.addr %s208, 2
          %s210 = smul.addr %s209, 4
          %s211 = scalar_lea.vmem %s0, %s210
        $region20: #{_lambda_.1} parent=15 // pred_fallthru
          _
        // Predicated region
        $region21: #{_lambda_.1} parent=15 // pred_check
          %p212 = pneg %p73
        $region22: #{_lambda_.1} parent=15 // pred_check_branch
          %214 = sbr.rel (%p212) target = $region24
        $region23: #{_lambda_.1} parent=15 // pred_region
          %p215 = scmp.lt.s32.totalorder %s22, 1
          %s216 = scalar_select %p215, %s22, 1
          %s217 = smul.addr %s216, 2
          %s218 = smul.addr %s217, 8
          %s219 = scalar_lea.vmem %s1, %s218
        $region24: #{_lambda_.1} parent=15 // pred_fallthru
          _
        // Predicated region
        $region25: #{_lambda_.1} parent=15 // pred_check
          %p220 = pneg %p101
        $region26: #{_lambda_.1} parent=15 // pred_check_branch
          %222 = sbr.rel (%p220) target = $region28
        $region27: #{_lambda_.1} parent=15 // pred_region
          %s223 = sand.u32 %s91, 1
          %s224 = scalar_lea.sflag [#allocation5], %s223
          %s225 = sand.u32 %s91, 1
          %s226 = smul.addr %s225, 512
          %s227 = scalar_lea.vmem [#allocation4], %s226
          %s228 = smul.u32 32, %s23
          %230 = vsyncadd %s224, 0
          %s231 = smul.addr %s228, 4
          %s232 = smul.addr %s22, 128
          %s233 = sadd.s32 %s231, %s232
          %s234 = smul.addr %s233, 4
          %s235 = scalar_lea.hbm %s2, %s234
          %s236 = sshll.u32 %s235, 4
          %s237 = int_to_ptr.hbm [resolvable:$true] %s236
          %s238 = sshll.u32 %s227, 4
          %s239 = int_to_ptr.vmem [resolvable:$true] %s238
          %244 = dma.hbm_to_vmem [thread:$0]  %s237, 8192, %s239, %s224, 256, 256, 16
        $region28: #{_lambda_.1} parent=15 // pred_fallthru
          _
        // Predicated region
        $region29: #{_lambda_.1} parent=15 // pred_check
          %p245 = pneg %p127
        $region30: #{_lambda_.1} parent=15 // pred_check_branch
          %247 = sbr.rel (%p245) target = $region32
        $region31: #{_lambda_.1} parent=15 // pred_region
          %p248 = scmp.lt.s32.totalorder %s22, 1
          %s249 = scalar_select %p248, %s22, 1
          %s250 = smul.addr %s249, 8
          %s251 = smul.addr %s250, 8
          %s252 = scalar_lea.vmem %s3, %s251
        $region32: #{_lambda_.1} parent=15 // pred_fallthru
          _
      $region16: #{_lambda_.1} parent=5 // pred_fallthru
        _
      %p253 = scmp.le.s32.totalorder 1, %s15
      %p254 = scmp.lt.s32.totalorder %s15, 3
      %p255 = pnand %p253, %p254
      %p256 = pneg %p255
      // Predicated region
      $region33: #{_lambda_.1} parent=5 // pred_check
        _
      $region34: #{_lambda_.1} parent=5 // pred_check_branch
        %258 = sbr.rel (%p255) target = $region36
      $region35: #{_lambda_.1} parent=5 // pred_region
        %s259 = ssub.s32 %s15, 1
        %s260 = sand.u32 %s94, 1
        %s261 = scalar_lea.sflag [#allocation5], %s260
        %s262 = sand.u32 %s94, 1
        %s263 = smul.addr %s262, 512
        %s264 = scalar_lea.vmem [#allocation4], %s263
        // Predicated region
        $region37: #{_lambda_.1} parent=35 // pred_check
          %p265 = pneg %p107
        $region38: #{_lambda_.1} parent=35 // pred_check_branch
          %267 = sbr.rel (%p265) target = $region40
        $region39: #{_lambda_.1} parent=35 // pred_region
          %269 = dma.done %s261, 8192
        $region40: #{_lambda_.1} parent=35 // pred_fallthru
          _
        %p270 = scmp.lt.s32.totalorder %s24, 1
        %s271 = scalar_select %p270, %s24, 1
        %s272 = smul.addr %s271, 2
        %s273 = smul.addr %s272, 4
        %s274 = scalar_lea.vmem %s0, %s273
        %p275 = pneg %p53
        %p276 = pneg %p50
        %p277 = scmp.lt.s32.totalorder %s24, 1
        %s278 = scalar_select %p277, %s24, 1
        %s279 = smul.addr %s278, 2
        %s280 = smul.addr %s279, 8
        %s281 = scalar_lea.vmem %s1, %s280
        %p282 = pneg %p79
        %p283 = pneg %p76
        %s284 = sand.u32 %s94, 1
        %s285 = scalar_lea.sflag [#allocation5], %s284
        %s286 = sand.u32 %s94, 1
        %s287 = smul.addr %s286, 512
        %s288 = scalar_lea.vmem [#allocation4], %s287
        %p289 = pneg %p107
        %p290 = pneg %p104
        %p291 = scmp.lt.s32.totalorder %s24, 1
        %s292 = scalar_select %p291, %s24, 1
        %s293 = smul.addr %s292, 8
        %s294 = smul.addr %s293, 8
        %s295 = scalar_lea.vmem %s3, %s294
        %p296 = pneg %p133
        %p297 = pneg %p130
        %p298 = pneg %p159
        %p299 = pneg %p156
        %p300 = scmp.lt.s32.totalorder %s24, 1
        %s301 = scalar_select %p300, %s24, 1
        %s302 = smul.addr %s301, 2
        %s303 = smul.addr %s302, 8
        %s304 = scalar_lea.vmem %s4, %s303
        %p305 = pneg %p185
        %p306 = pneg %p182
        %p307 = scmp.lt.s32.totalorder %s24, 1
        %s308 = scalar_select %p307, %s24, 1
        %s309 = smul.addr %s308, 2
        %s310 = smul.addr %s309, 8
        %s311 = scalar_lea.vmem %s5, %s310
        %p312 = scmp.lt.s32.totalorder %s24, 1
        %s313 = scalar_select %p312, %s24, 1
        %s314 = smul.addr %s313, 2
        %s315 = smul.addr %s314, 4
        %s316 = scalar_lea.vmem %s0, %s315
        %p317 = scmp.lt.s32.totalorder %s24, 1
        %s318 = scalar_select %p317, %s24, 1
        %s319 = smul.addr %s318, 2
        %s320 = smul.addr %s319, 8
        %s321 = scalar_lea.vmem %s1, %s320
        %s322 = smul.u32 32, %s25
        %p323 = scmp.lt.s32.totalorder %s24, 1
        %s324 = scalar_select %p323, %s24, 1
        %s325 = smul.addr %s324, 8
        %s326 = smul.addr %s325, 8
        %s327 = scalar_lea.vmem %s3, %s326
        %p328 = scmp.lt.s32.totalorder %s24, 1
        %s329 = scalar_select %p328, %s24, 1
        %s330 = smul.addr %s329, 2
        %s331 = smul.addr %s330, 8
        %s332 = scalar_lea.vmem %s4, %s331
        %p333 = scmp.lt.s32.totalorder %s24, 1
        %s334 = scalar_select %p333, %s24, 1
        %s335 = smul.addr %s334, 2
        %s336 = smul.addr %s335, 8
        %s337 = scalar_lea.vmem %s5, %s336
        %p339 = scmp.eq.s32.totalorder %s24, 0
        %p340 = scmp.eq.s32.totalorder %s25, 0
        %p341 = pnand %p339, %p340
        %p342 = pneg %p341
        // Predicated region
        $region41: #{_lambda_.1} parent=35 // pred_check
          _
        $region42: #{_lambda_.1} parent=35 // pred_check_branch
          %344 = sbr.rel (%p341) target = $region44
        $region43: #{_lambda_.1} parent=35 // pred_region
          %345 = vst [vmem:[#allocation2] sm:$0xf] 0
          %346 = vst [vmem:[#allocation2 + $0x8] sm:$0xf] 0
        $region44: #{_lambda_.1} parent=35 // pred_fallthru
          _
        // Predicated region
        $region45: #{_lambda_.1} parent=35 // pred_check
          %p347 = pneg %p340
        $region46: #{_lambda_.1} parent=35 // pred_check_branch
          %349 = sbr.rel (%p347) target = $region48
        $region47: #{_lambda_.1} parent=35 // pred_region
          %v350 = vld [vmem:[%s316] sm:$0xf]
          %v351 = vld [vmem:[%s316 + $0x4] sm:$0xf]
          %352 = vst [vmem:[#allocation2 + $0x4] sm:$0xf] %v350
          %353 = vst [vmem:[#allocation2 + $0xc] sm:$0xf] %v351
          %v354 = vld [vmem:[%s327] sm:$0xff]
          %v355 = vld [vmem:[%s327 + $0x8] sm:$0xff]
          %v356 = vld [vmem:[%s327 + $0x10] sm:$0xff]
          %v357 = vld [vmem:[%s327 + $0x18] sm:$0xff]
          %v358 = vld [vmem:[%s327 + $0x20] sm:$0xff]
          %v359 = vld [vmem:[%s327 + $0x28] sm:$0xff]
          %v360 = vld [vmem:[%s327 + $0x30] sm:$0xff]
          %v361 = vld [vmem:[%s327 + $0x38] sm:$0xff]
          %362 = vst [vmem:[#allocation3] sm:$0xff] %v354
          %363 = vst [vmem:[#allocation3 + $0x8] sm:$0xff] %v355
          %364 = vst [vmem:[#allocation3 + $0x10] sm:$0xff] %v356
          %365 = vst [vmem:[#allocation3 + $0x18] sm:$0xff] %v357
          %366 = vst [vmem:[#allocation3 + $0x20] sm:$0xff] %v358
          %367 = vst [vmem:[#allocation3 + $0x28] sm:$0xff] %v359
          %368 = vst [vmem:[#allocation3 + $0x30] sm:$0xff] %v360
          %369 = vst [vmem:[#allocation3 + $0x38] sm:$0xff] %v361
        $region48: #{_lambda_.1} parent=35 // pred_fallthru
          _
        %s370 = smul.u32 %s25, 256
        %v371 = vld [vmem:[#allocation3] sm:$0xff]
        %v372 = vld [vmem:[#allocation3 + $0x8] sm:$0xff]
        %v373 = vld [vmem:[#allocation3 + $0x10] sm:$0xff]
        %v374 = vld [vmem:[#allocation3 + $0x18] sm:$0xff]
        %v375 = vld [vmem:[#allocation3 + $0x20] sm:$0xff]
        %v376 = vld [vmem:[#allocation3 + $0x28] sm:$0xff]
        %v377 = vld [vmem:[#allocation3 + $0x30] sm:$0xff]
        %v378 = vld [vmem:[#allocation3 + $0x38] sm:$0xff]
        %s379 = sshra.s32 %s370, 7
        %s380 = sand.u32 %s370, 127
        %s381 = smul.addr %s379, 4
        %s382 = scalar_lea.vmem [#allocation2], %s381
        %v383 = vld [vmem:[%s382] sm:$0xff]
        %v384 = vld [vmem:[%s382 + $0x8] sm:$0xff]
        %v385 = vld [vmem:[%s264] sm:$0xff]
        %v386 = vld [vmem:[%s264 + $0x8] sm:$0xff]
        %v387 = vld [vmem:[%s264 + $0x10] sm:$0xff]
        %v388 = vld [vmem:[%s264 + $0x18] sm:$0xff]
        %v389 = vld [vmem:[%s264 + $0x20] sm:$0xff]
        %v390 = vld [vmem:[%s264 + $0x28] sm:$0xff]
        %v391 = vld [vmem:[%s264 + $0x30] sm:$0xff]
        %v392 = vld [vmem:[%s264 + $0x38] sm:$0xff]
        %v393 = vld [vmem:[%s264 + $0x40] sm:$0xff]
        %v394 = vld [vmem:[%s264 + $0x48] sm:$0xff]
        %v395 = vld [vmem:[%s264 + $0x50] sm:$0xff]
        %v396 = vld [vmem:[%s264 + $0x58] sm:$0xff]
        %v397 = vld [vmem:[%s264 + $0x60] sm:$0xff]
        %v398 = vld [vmem:[%s264 + $0x68] sm:$0xff]
        %v399 = vld [vmem:[%s264 + $0x70] sm:$0xff]
        %v400 = vld [vmem:[%s264 + $0x78] sm:$0xff]
        %v401 = vld [vmem:[%s264 + $0x80] sm:$0xff]
        %v402 = vld [vmem:[%s264 + $0x88] sm:$0xff]
        %v403 = vld [vmem:[%s264 + $0x90] sm:$0xff]
        %v404 = vld [vmem:[%s264 + $0x98] sm:$0xff]
        %v405 = vld [vmem:[%s264 + $0xa0] sm:$0xff]
        %v406 = vld [vmem:[%s264 + $0xa8] sm:$0xff]
        %v407 = vld [vmem:[%s264 + $0xb0] sm:$0xff]
        %v408 = vld [vmem:[%s264 + $0xb8] sm:$0xff]
        %v409 = vld [vmem:[%s264 + $0xc0] sm:$0xff]
        %v410 = vld [vmem:[%s264 + $0xc8] sm:$0xff]
        %v411 = vld [vmem:[%s264 + $0xd0] sm:$0xff]
        %v412 = vld [vmem:[%s264 + $0xd8] sm:$0xff]
        %v413 = vld [vmem:[%s264 + $0xe0] sm:$0xff]
        %v414 = vld [vmem:[%s264 + $0xe8] sm:$0xff]
        %v415 = vld [vmem:[%s264 + $0xf0] sm:$0xff]
        %v416 = vld [vmem:[%s264 + $0xf8] sm:$0xff]
        %v417 = vld [vmem:[%s264 + $0x100] sm:$0xff]
        %v418 = vld [vmem:[%s264 + $0x108] sm:$0xff]
        %v419 = vld [vmem:[%s264 + $0x110] sm:$0xff]
        %v420 = vld [vmem:[%s264 + $0x118] sm:$0xff]
        %v421 = vld [vmem:[%s264 + $0x120] sm:$0xff]
        %v422 = vld [vmem:[%s264 + $0x128] sm:$0xff]
        %v423 = vld [vmem:[%s264 + $0x130] sm:$0xff]
        %v424 = vld [vmem:[%s264 + $0x138] sm:$0xff]
        %v425 = vld [vmem:[%s264 + $0x140] sm:$0xff]
        %v426 = vld [vmem:[%s264 + $0x148] sm:$0xff]
        %v427 = vld [vmem:[%s264 + $0x150] sm:$0xff]
        %v428 = vld [vmem:[%s264 + $0x158] sm:$0xff]
        %v429 = vld [vmem:[%s264 + $0x160] sm:$0xff]
        %v430 = vld [vmem:[%s264 + $0x168] sm:$0xff]
        %v431 = vld [vmem:[%s264 + $0x170] sm:$0xff]
        %v432 = vld [vmem:[%s264 + $0x178] sm:$0xff]
        %v433 = vld [vmem:[%s264 + $0x180] sm:$0xff]
        %v434 = vld [vmem:[%s264 + $0x188] sm:$0xff]
        %v435 = vld [vmem:[%s264 + $0x190] sm:$0xff]
        %v436 = vld [vmem:[%s264 + $0x198] sm:$0xff]
        %v437 = vld [vmem:[%s264 + $0x1a0] sm:$0xff]
        %v438 = vld [vmem:[%s264 + $0x1a8] sm:$0xff]
        %v439 = vld [vmem:[%s264 + $0x1b0] sm:$0xff]
        %v440 = vld [vmem:[%s264 + $0x1b8] sm:$0xff]
        %v441 = vld [vmem:[%s264 + $0x1c0] sm:$0xff]
        %v442 = vld [vmem:[%s264 + $0x1c8] sm:$0xff]
        %v443 = vld [vmem:[%s264 + $0x1d0] sm:$0xff]
        %v444 = vld [vmem:[%s264 + $0x1d8] sm:$0xff]
        %v445 = vld [vmem:[%s264 + $0x1e0] sm:$0xff]
        %v446 = vld [vmem:[%s264 + $0x1e8] sm:$0xff]
        %v447 = vld [vmem:[%s264 + $0x1f0] sm:$0xff]
        %v448 = vld [vmem:[%s264 + $0x1f8] sm:$0xff]
        %v451 = vunpack.c.l.b16 %v383
        %v452 = vunpack.c.h.b16 %v383
        %v453 = vunpack.c.l.b16 %v384
        %v454 = vunpack.c.h.b16 %v384
        %v455 = vpack.c.b16 %v453, %v451
        %v456 = vpack.c.b16 %v454, %v452
        %v523 = vunpack.c.l.b16 %v385
        %v524 = vunpack.c.h.b16 %v385
        %v525 = vunpack.c.l.b16 %v386
        %v526 = vunpack.c.h.b16 %v386
        %v527 = vunpack.c.l.b16 %v387
        %v528 = vunpack.c.h.b16 %v387
        %v529 = vunpack.c.l.b16 %v388
        %v530 = vunpack.c.h.b16 %v388
        %v531 = vunpack.c.l.b16 %v389
        %v532 = vunpack.c.h.b16 %v389
        %v533 = vunpack.c.l.b16 %v390
        %v534 = vunpack.c.h.b16 %v390
        %v535 = vunpack.c.l.b16 %v391
        %v536 = vunpack.c.h.b16 %v391
        %v537 = vunpack.c.l.b16 %v392
        %v538 = vunpack.c.h.b16 %v392
        %v539 = vunpack.c.l.b16 %v393
        %v540 = vunpack.c.h.b16 %v393
        %v541 = vunpack.c.l.b16 %v394
        %v542 = vunpack.c.h.b16 %v394
        %v543 = vunpack.c.l.b16 %v395
        %v544 = vunpack.c.h.b16 %v395
        %v545 = vunpack.c.l.b16 %v396
        %v546 = vunpack.c.h.b16 %v396
        %v547 = vunpack.c.l.b16 %v397
        %v548 = vunpack.c.h.b16 %v397
        %v549 = vunpack.c.l.b16 %v398
        %v550 = vunpack.c.h.b16 %v398
        %v551 = vunpack.c.l.b16 %v399
        %v552 = vunpack.c.h.b16 %v399
        %v553 = vunpack.c.l.b16 %v400
        %v554 = vunpack.c.h.b16 %v400
        %v555 = vunpack.c.l.b16 %v401
        %v556 = vunpack.c.h.b16 %v401
        %v557 = vunpack.c.l.b16 %v402
        %v558 = vunpack.c.h.b16 %v402
        %v559 = vunpack.c.l.b16 %v403
        %v560 = vunpack.c.h.b16 %v403
        %v561 = vunpack.c.l.b16 %v404
        %v562 = vunpack.c.h.b16 %v404
        %v563 = vunpack.c.l.b16 %v405
        %v564 = vunpack.c.h.b16 %v405
        %v565 = vunpack.c.l.b16 %v406
        %v566 = vunpack.c.h.b16 %v406
        %v567 = vunpack.c.l.b16 %v407
        %v568 = vunpack.c.h.b16 %v407
        %v569 = vunpack.c.l.b16 %v408
        %v570 = vunpack.c.h.b16 %v408
        %v571 = vunpack.c.l.b16 %v409
        %v572 = vunpack.c.h.b16 %v409
        %v573 = vunpack.c.l.b16 %v410
        %v574 = vunpack.c.h.b16 %v410
        %v575 = vunpack.c.l.b16 %v411
        %v576 = vunpack.c.h.b16 %v411
        %v577 = vunpack.c.l.b16 %v412
        %v578 = vunpack.c.h.b16 %v412
        %v579 = vunpack.c.l.b16 %v413
        %v580 = vunpack.c.h.b16 %v413
        %v581 = vunpack.c.l.b16 %v414
        %v582 = vunpack.c.h.b16 %v414
        %v583 = vunpack.c.l.b16 %v415
        %v584 = vunpack.c.h.b16 %v415
        %v585 = vunpack.c.l.b16 %v416
        %v586 = vunpack.c.h.b16 %v416
        %v587 = vunpack.c.l.b16 %v417
        %v588 = vunpack.c.h.b16 %v417
        %v589 = vunpack.c.l.b16 %v418
        %v590 = vunpack.c.h.b16 %v418
        %v591 = vunpack.c.l.b16 %v419
        %v592 = vunpack.c.h.b16 %v419
        %v593 = vunpack.c.l.b16 %v420
        %v594 = vunpack.c.h.b16 %v420
        %v595 = vunpack.c.l.b16 %v421
        %v596 = vunpack.c.h.b16 %v421
        %v597 = vunpack.c.l.b16 %v422
        %v598 = vunpack.c.h.b16 %v422
        %v599 = vunpack.c.l.b16 %v423
        %v600 = vunpack.c.h.b16 %v423
        %v601 = vunpack.c.l.b16 %v424
        %v602 = vunpack.c.h.b16 %v424
        %v603 = vunpack.c.l.b16 %v425
        %v604 = vunpack.c.h.b16 %v425
        %v605 = vunpack.c.l.b16 %v426
        %v606 = vunpack.c.h.b16 %v426
        %v607 = vunpack.c.l.b16 %v427
        %v608 = vunpack.c.h.b16 %v427
        %v609 = vunpack.c.l.b16 %v428
        %v610 = vunpack.c.h.b16 %v428
        %v611 = vunpack.c.l.b16 %v429
        %v612 = vunpack.c.h.b16 %v429
        %v613 = vunpack.c.l.b16 %v430
        %v614 = vunpack.c.h.b16 %v430
        %v615 = vunpack.c.l.b16 %v431
        %v616 = vunpack.c.h.b16 %v431
        %v617 = vunpack.c.l.b16 %v432
        %v618 = vunpack.c.h.b16 %v432
        %v619 = vunpack.c.l.b16 %v433
        %v620 = vunpack.c.h.b16 %v433
        %v621 = vunpack.c.l.b16 %v434
        %v622 = vunpack.c.h.b16 %v434
        %v623 = vunpack.c.l.b16 %v435
        %v624 = vunpack.c.h.b16 %v435
        %v625 = vunpack.c.l.b16 %v436
        %v626 = vunpack.c.h.b16 %v436
        %v627 = vunpack.c.l.b16 %v437
        %v628 = vunpack.c.h.b16 %v437
        %v629 = vunpack.c.l.b16 %v438
        %v630 = vunpack.c.h.b16 %v438
        %v631 = vunpack.c.l.b16 %v439
        %v632 = vunpack.c.h.b16 %v439
        %v633 = vunpack.c.l.b16 %v440
        %v634 = vunpack.c.h.b16 %v440
        %v635 = vunpack.c.l.b16 %v441
        %v636 = vunpack.c.h.b16 %v441
        %v637 = vunpack.c.l.b16 %v442
        %v638 = vunpack.c.h.b16 %v442
        %v639 = vunpack.c.l.b16 %v443
        %v640 = vunpack.c.h.b16 %v443
        %v641 = vunpack.c.l.b16 %v444
        %v642 = vunpack.c.h.b16 %v444
        %v643 = vunpack.c.l.b16 %v445
        %v644 = vunpack.c.h.b16 %v445
        %v645 = vunpack.c.l.b16 %v446
        %v646 = vunpack.c.h.b16 %v446
        %v647 = vunpack.c.l.b16 %v447
        %v648 = vunpack.c.h.b16 %v447
        %v649 = vunpack.c.l.b16 %v448
        %v650 = vunpack.c.h.b16 %v448
        %v651 = vpack.c.b16 %v527, %v523
        %v652 = vpack.c.b16 %v528, %v524
        %v653 = vpack.c.b16 %v529, %v525
        %v654 = vpack.c.b16 %v530, %v526
        %v655 = vpack.c.b16 %v535, %v531
        %v656 = vpack.c.b16 %v536, %v532
        %v657 = vpack.c.b16 %v537, %v533
        %v658 = vpack.c.b16 %v538, %v534
        %v659 = vpack.c.b16 %v543, %v539
        %v660 = vpack.c.b16 %v544, %v540
        %v661 = vpack.c.b16 %v545, %v541
        %v662 = vpack.c.b16 %v546, %v542
        %v663 = vpack.c.b16 %v551, %v547
        %v664 = vpack.c.b16 %v552, %v548
        %v665 = vpack.c.b16 %v553, %v549
        %v666 = vpack.c.b16 %v554, %v550
        %v667 = vpack.c.b16 %v559, %v555
        %v668 = vpack.c.b16 %v560, %v556
        %v669 = vpack.c.b16 %v561, %v557
        %v670 = vpack.c.b16 %v562, %v558
        %v671 = vpack.c.b16 %v567, %v563
        %v672 = vpack.c.b16 %v568, %v564
        %v673 = vpack.c.b16 %v569, %v565
        %v674 = vpack.c.b16 %v570, %v566
        %v675 = vpack.c.b16 %v575, %v571
        %v676 = vpack.c.b16 %v576, %v572
        %v677 = vpack.c.b16 %v577, %v573
        %v678 = vpack.c.b16 %v578, %v574
        %v679 = vpack.c.b16 %v583, %v579
        %v680 = vpack.c.b16 %v584, %v580
        %v681 = vpack.c.b16 %v585, %v581
        %v682 = vpack.c.b16 %v586, %v582
        %v683 = vpack.c.b16 %v591, %v587
        %v684 = vpack.c.b16 %v592, %v588
        %v685 = vpack.c.b16 %v593, %v589
        %v686 = vpack.c.b16 %v594, %v590
        %v687 = vpack.c.b16 %v599, %v595
        %v688 = vpack.c.b16 %v600, %v596
        %v689 = vpack.c.b16 %v601, %v597
        %v690 = vpack.c.b16 %v602, %v598
        %v691 = vpack.c.b16 %v607, %v603
        %v692 = vpack.c.b16 %v608, %v604
        %v693 = vpack.c.b16 %v609, %v605
        %v694 = vpack.c.b16 %v610, %v606
        %v695 = vpack.c.b16 %v615, %v611
        %v696 = vpack.c.b16 %v616, %v612
        %v697 = vpack.c.b16 %v617, %v613
        %v698 = vpack.c.b16 %v618, %v614
        %v699 = vpack.c.b16 %v623, %v619
        %v700 = vpack.c.b16 %v624, %v620
        %v701 = vpack.c.b16 %v625, %v621
        %v702 = vpack.c.b16 %v626, %v622
        %v703 = vpack.c.b16 %v631, %v627
        %v704 = vpack.c.b16 %v632, %v628
        %v705 = vpack.c.b16 %v633, %v629
        %v706 = vpack.c.b16 %v634, %v630
        %v707 = vpack.c.b16 %v639, %v635
        %v708 = vpack.c.b16 %v640, %v636
        %v709 = vpack.c.b16 %v641, %v637
        %v710 = vpack.c.b16 %v642, %v638
        %v711 = vpack.c.b16 %v647, %v643
        %v712 = vpack.c.b16 %v648, %v644
        %v713 = vpack.c.b16 %v649, %v645
        %v714 = vpack.c.b16 %v650, %v646
        %779 = vmatpush.bf16.msra.mxu0 %v679
        %780 = vmatpush.bf16.msra.mxu0 %v675
        %781 = vmatpush.bf16.msra.mxu0 %v671
        %782 = vmatpush.bf16.msra.mxu0 %v667
        %783 = vmatpush.bf16.msra.mxu0 %v663
        %784 = vmatpush.bf16.msra.mxu0 %v659
        %785 = vmatpush.bf16.msra.mxu0 %v655
        %786 = vmatpush.bf16.msra.mxu0 %v651
        %787 = vmatmul.bf16.gmra.mxu0 %v455
        %v788 = vpop.f32.mrf.mxu0
        %v789 = vadd.f32 0.0, %v788
        %v790 = vpop.f32.mrf.mxu0
        %v791 = vadd.f32 0.0, %v790
        %792 = vdwg.mxu0
        %793 = vmatpush.bf16.msra.mxu0 %v711
        %794 = vmatpush.bf16.msra.mxu0 %v707
        %795 = vmatpush.bf16.msra.mxu0 %v703
        %796 = vmatpush.bf16.msra.mxu0 %v699
        %797 = vmatpush.bf16.msra.mxu0 %v695
        %798 = vmatpush.bf16.msra.mxu0 %v691
        %799 = vmatpush.bf16.msra.mxu0 %v687
        %800 = vmatpush.bf16.msra.mxu0 %v683
        %801 = vmatmul.bf16.gmra.mxu0 %v456
        %v802 = vpop.f32.mrf.mxu0
        %v803 = vadd.f32 %v789, %v802
        %v804 = vpop.f32.mrf.mxu0
        %v805 = vadd.f32 %v791, %v804
        %806 = vdwg.mxu0
        %807 = vmatpush.bf16.msra.mxu0 %v680
        %808 = vmatpush.bf16.msra.mxu0 %v676
        %809 = vmatpush.bf16.msra.mxu0 %v672
        %810 = vmatpush.bf16.msra.mxu0 %v668
        %811 = vmatpush.bf16.msra.mxu0 %v664
        %812 = vmatpush.bf16.msra.mxu0 %v660
        %813 = vmatpush.bf16.msra.mxu0 %v656
        %814 = vmatpush.bf16.msra.mxu0 %v652
        %815 = vmatmul.bf16.gmra.mxu0 %v455
        %v816 = vpop.f32.mrf.mxu0
        %v817 = vadd.f32 0.0, %v816
        %v818 = vpop.f32.mrf.mxu0
        %v819 = vadd.f32 0.0, %v818
        %820 = vdwg.mxu0
        %821 = vmatpush.bf16.msra.mxu0 %v712
        %822 = vmatpush.bf16.msra.mxu0 %v708
        %823 = vmatpush.bf16.msra.mxu0 %v704
        %824 = vmatpush.bf16.msra.mxu0 %v700
        %825 = vmatpush.bf16.msra.mxu0 %v696
        %826 = vmatpush.bf16.msra.mxu0 %v692
        %827 = vmatpush.bf16.msra.mxu0 %v688
        %828 = vmatpush.bf16.msra.mxu0 %v684
        %829 = vmatmul.bf16.gmra.mxu0 %v456
        %v830 = vpop.f32.mrf.mxu0
        %v831 = vadd.f32 %v817, %v830
        %v832 = vpop.f32.mrf.mxu0
        %v833 = vadd.f32 %v819, %v832
        %834 = vdwg.mxu0
        %835 = vmatpush.bf16.msra.mxu0 %v681
        %836 = vmatpush.bf16.msra.mxu0 %v677
        %837 = vmatpush.bf16.msra.mxu0 %v673
        %838 = vmatpush.bf16.msra.mxu0 %v669
        %839 = vmatpush.bf16.msra.mxu0 %v665
        %840 = vmatpush.bf16.msra.mxu0 %v661
        %841 = vmatpush.bf16.msra.mxu0 %v657
        %842 = vmatpush.bf16.msra.mxu0 %v653
        %843 = vmatmul.bf16.gmra.mxu0 %v455
        %v844 = vpop.f32.mrf.mxu0
        %v845 = vadd.f32 0.0, %v844
        %v846 = vpop.f32.mrf.mxu0
        %v847 = vadd.f32 0.0, %v846
        %848 = vdwg.mxu0
        %849 = vmatpush.bf16.msra.mxu0 %v713
        %850 = vmatpush.bf16.msra.mxu0 %v709
        %851 = vmatpush.bf16.msra.mxu0 %v705
        %852 = vmatpush.bf16.msra.mxu0 %v701
        %853 = vmatpush.bf16.msra.mxu0 %v697
        %854 = vmatpush.bf16.msra.mxu0 %v693
        %855 = vmatpush.bf16.msra.mxu0 %v689
        %856 = vmatpush.bf16.msra.mxu0 %v685
        %857 = vmatmul.bf16.gmra.mxu0 %v456
        %v858 = vpop.f32.mrf.mxu0
        %v859 = vadd.f32 %v845, %v858
        %v860 = vpop.f32.mrf.mxu0
        %v861 = vadd.f32 %v847, %v860
        %862 = vdwg.mxu0
        %863 = vmatpush.bf16.msra.mxu0 %v682
        %864 = vmatpush.bf16.msra.mxu0 %v678
        %865 = vmatpush.bf16.msra.mxu0 %v674
        %866 = vmatpush.bf16.msra.mxu0 %v670
        %867 = vmatpush.bf16.msra.mxu0 %v666
        %868 = vmatpush.bf16.msra.mxu0 %v662
        %869 = vmatpush.bf16.msra.mxu0 %v658
        %870 = vmatpush.bf16.msra.mxu0 %v654
        %871 = vmatmul.bf16.gmra.mxu0 %v455
        %v872 = vpop.f32.mrf.mxu0
        %v873 = vadd.f32 0.0, %v872
        %v874 = vpop.f32.mrf.mxu0
        %v875 = vadd.f32 0.0, %v874
        %876 = vdwg.mxu0
        %877 = vmatpush.bf16.msra.mxu0 %v714
        %878 = vmatpush.bf16.msra.mxu0 %v710
        %879 = vmatpush.bf16.msra.mxu0 %v706
        %880 = vmatpush.bf16.msra.mxu0 %v702
        %881 = vmatpush.bf16.msra.mxu0 %v698
        %882 = vmatpush.bf16.msra.mxu0 %v694
        %883 = vmatpush.bf16.msra.mxu0 %v690
        %884 = vmatpush.bf16.msra.mxu0 %v686
        %885 = vmatmul.bf16.gmra.mxu0 %v456
        %v886 = vpop.f32.mrf.mxu0
        %v887 = vadd.f32 %v873, %v886
        %v888 = vpop.f32.mrf.mxu0
        %v889 = vadd.f32 %v875, %v888
        %890 = vdwg.mxu0
        %v891 = vadd.f32 %v371, %v803
        %v892 = vadd.f32 %v372, %v831
        %v893 = vadd.f32 %v373, %v859
        %v894 = vadd.f32 %v374, %v887
        %v895 = vadd.f32 %v375, %v805
        %v896 = vadd.f32 %v376, %v833
        %v897 = vadd.f32 %v377, %v861
        %v898 = vadd.f32 %v378, %v889
        %899 = vst [vmem:[#allocation3] sm:$0xff] %v891
        %900 = vst [vmem:[#allocation3 + $0x8] sm:$0xff] %v892
        %901 = vst [vmem:[#allocation3 + $0x10] sm:$0xff] %v893
        %902 = vst [vmem:[#allocation3 + $0x18] sm:$0xff] %v894
        %903 = vst [vmem:[#allocation3 + $0x20] sm:$0xff] %v895
        %904 = vst [vmem:[#allocation3 + $0x28] sm:$0xff] %v896
        %905 = vst [vmem:[#allocation3 + $0x30] sm:$0xff] %v897
        %906 = vst [vmem:[#allocation3 + $0x38] sm:$0xff] %v898
        // Predicated region
        $region49: #{_lambda_.1} parent=35 // pred_check
          %p907 = pneg %p340
        $region50: #{_lambda_.1} parent=35 // pred_check_branch
          %909 = sbr.rel (%p907) target = $region52
        $region51: #{_lambda_.1} parent=35 // pred_region
          %v910 = vld [vmem:[#allocation3] sm:$0xff]
          %v911 = vld [vmem:[#allocation3 + $0x8] sm:$0xff]
          %v912 = vld [vmem:[#allocation3 + $0x10] sm:$0xff]
          %v913 = vld [vmem:[#allocation3 + $0x18] sm:$0xff]
          %v914 = vld [vmem:[#allocation3 + $0x20] sm:$0xff]
          %v915 = vld [vmem:[#allocation3 + $0x28] sm:$0xff]
          %v916 = vld [vmem:[#allocation3 + $0x30] sm:$0xff]
          %v917 = vld [vmem:[#allocation3 + $0x38] sm:$0xff]
          %v918 = vxor.u32 %v910, 2147483648
          %v919 = vxor.u32 %v911, 2147483648
          %v920 = vxor.u32 %v912, 2147483648
          %v921 = vxor.u32 %v914, 2147483648
          %v922 = vxor.u32 %v915, 2147483648
          %v923 = vxor.u32 %v916, 2147483648
          %v924 = vmul.f32 %v918, 1.442695
          %v925 = vpow.pop %v924
          %v926 = vmul.f32 %v919, 1.442695
          %v927 = vpow.pop %v926
          %v928 = vmul.f32 %v920, 1.442695
          %v929 = vpow.pop %v928
          %v930 = vmul.f32 %v921, 1.442695
          %v931 = vpow.pop %v930
          %v932 = vmul.f32 %v922, 1.442695
          %v933 = vpow.pop %v932
          %v934 = vmul.f32 %v923, 1.442695
          %v935 = vpow.pop %v934
          %v936 = vadd.f32 %v925, 1.0
          %v937 = vadd.f32 %v927, 1.0
          %v938 = vadd.f32 %v929, 1.0
          %v939 = vadd.f32 %v931, 1.0
          %v940 = vadd.f32 %v933, 1.0
          %v941 = vadd.f32 %v935, 1.0
          %v942 = vrcp.pop %v936
          %v943 = vmul.f32 %v936, %v942
          %v944 = vsub.f32 1.0, %v943
          %v945 = vmul.f32 %v942, %v944
          %v946 = vadd.f32 %v942, %v945
          %vm947 = vweird.f32 %v936
          %vm948 = vweird.f32 %v942
          %vm949 = vmor %vm947, %vm948
          %v950 = vsel %vm949, %v942, %v946
          %v951 = vand.u32 2147483647, %v936
          %vm952 = vcmp.eq.f32.partialorder %v951, 8.507059e+37
          %v953 = vand.u32 %v936, 2147483648
          %v954 = vor.u32 1.1754944e-38, %v953
          %v955 = vsel %vm952, %v954, %v950
          %v956 = vmul.f32 1.0, %v955
          %v957 = vrcp.pop %v937
          %v958 = vmul.f32 %v937, %v957
          %v959 = vsub.f32 1.0, %v958
          %v960 = vmul.f32 %v957, %v959
          %v961 = vadd.f32 %v957, %v960
          %vm962 = vweird.f32 %v937
          %vm963 = vweird.f32 %v957
          %vm964 = vmor %vm962, %vm963
          %v965 = vsel %vm964, %v957, %v961
          %v966 = vand.u32 2147483647, %v937
          %vm967 = vcmp.eq.f32.partialorder %v966, 8.507059e+37
          %v968 = vand.u32 %v937, 2147483648
          %v969 = vor.u32 1.1754944e-38, %v968
          %v970 = vsel %vm967, %v969, %v965
          %v971 = vmul.f32 1.0, %v970
          %v972 = vrcp.pop %v938
          %v973 = vmul.f32 %v938, %v972
          %v974 = vsub.f32 1.0, %v973
          %v975 = vmul.f32 %v972, %v974
          %v976 = vadd.f32 %v972, %v975
          %vm977 = vweird.f32 %v938
          %vm978 = vweird.f32 %v972
          %vm979 = vmor %vm977, %vm978
          %v980 = vsel %vm979, %v972, %v976
          %v981 = vand.u32 2147483647, %v938
          %vm982 = vcmp.eq.f32.partialorder %v981, 8.507059e+37
          %v983 = vand.u32 %v938, 2147483648
          %v984 = vor.u32 1.1754944e-38, %v983
          %v985 = vsel %vm982, %v984, %v980
          %v986 = vmul.f32 1.0, %v985
          %v987 = vrcp.pop %v939
          %v988 = vmul.f32 %v939, %v987
          %v989 = vsub.f32 1.0, %v988
          %v990 = vmul.f32 %v987, %v989
          %v991 = vadd.f32 %v987, %v990
          %vm992 = vweird.f32 %v939
          %vm993 = vweird.f32 %v987
          %vm994 = vmor %vm992, %vm993
          %v995 = vsel %vm994, %v987, %v991
          %v996 = vand.u32 2147483647, %v939
          %vm997 = vcmp.eq.f32.partialorder %v996, 8.507059e+37
          %v998 = vand.u32 %v939, 2147483648
          %v999 = vor.u32 1.1754944e-38, %v998
          %v1000 = vsel %vm997, %v999, %v995
          %v1001 = vmul.f32 1.0, %v1000
          %v1002 = vrcp.pop %v940
          %v1003 = vmul.f32 %v940, %v1002
          %v1004 = vsub.f32 1.0, %v1003
          %v1005 = vmul.f32 %v1002, %v1004
          %v1006 = vadd.f32 %v1002, %v1005
          %vm1007 = vweird.f32 %v940
          %vm1008 = vweird.f32 %v1002
          %vm1009 = vmor %vm1007, %vm1008
          %v1010 = vsel %vm1009, %v1002, %v1006
          %v1011 = vand.u32 2147483647, %v940
          %vm1012 = vcmp.eq.f32.partialorder %v1011, 8.507059e+37
          %v1013 = vand.u32 %v940, 2147483648
          %v1014 = vor.u32 1.1754944e-38, %v1013
          %v1015 = vsel %vm1012, %v1014, %v1010
          %v1016 = vmul.f32 1.0, %v1015
          %v1017 = vrcp.pop %v941
          %v1018 = vmul.f32 %v941, %v1017
          %v1019 = vsub.f32 1.0, %v1018
          %v1020 = vmul.f32 %v1017, %v1019
          %v1021 = vadd.f32 %v1017, %v1020
          %vm1022 = vweird.f32 %v941
          %vm1023 = vweird.f32 %v1017
          %vm1024 = vmor %vm1022, %vm1023
          %v1025 = vsel %vm1024, %v1017, %v1021
          %v1026 = vand.u32 2147483647, %v941
          %vm1027 = vcmp.eq.f32.partialorder %v1026, 8.507059e+37
          %v1028 = vand.u32 %v941, 2147483648
          %v1029 = vor.u32 1.1754944e-38, %v1028
          %v1030 = vsel %vm1027, %v1029, %v1025
          %v1031 = vmul.f32 1.0, %v1030
          %v1032 = vtanh.pop %v913
          %v1033 = vtanh.pop %v917
          %v1034 = vld [vmem:[%s321] sm:$0xff]
          %v1035 = vld [vmem:[%s321 + $0x8] sm:$0xff]
          %v1036 = vmul.f32 %v971, %v1034
          %v1037 = vmul.f32 %v1016, %v1035
          %v1038 = vmul.f32 %v956, %v1032
          %v1039 = vmul.f32 %v1001, %v1033
          %v1040 = vadd.f32 %v1036, %v1038
          %v1041 = vadd.f32 %v1037, %v1039
          %v1042 = vtanh.pop %v1040
          %v1043 = vtanh.pop %v1041
          %v1044 = vmul.f32 %v986, %v1042
          %v1045 = vmul.f32 %v1031, %v1043
          %1046 = vst [vmem:[%s332] sm:$0xff] %v1044
          %1047 = vst [vmem:[%s332 + $0x8] sm:$0xff] %v1045
          %1048 = vst [vmem:[%s337] sm:$0xff] %v1040
          %1049 = vst [vmem:[%s337 + $0x8] sm:$0xff] %v1041
          %v1050 = vpack.c.bf16 %v1044, %v1044
          %v1051 = vpack.c.bf16 %v1045, %v1045
          %1052 = vst [vmem:[#allocation2] sm:$0xf] %v1050
          %1053 = vst [vmem:[#allocation2 + $0x8] sm:$0xf] %v1051
        $region52: #{_lambda_.1} parent=35 // pred_fallthru
          _
        %p1054 = scmp.lt.s32.totalorder %s24, 1
        %s1055 = scalar_select %p1054, %s24, 1
        %s1056 = smul.addr %s1055, 2
        %s1057 = smul.addr %s1056, 8
        %s1058 = scalar_lea.vmem %s4, %s1057
        %p1059 = scmp.lt.s32.totalorder %s24, 1
        %s1060 = scalar_select %p1059, %s24, 1
        %s1061 = smul.addr %s1060, 2
        %s1062 = smul.addr %s1061, 8
        %s1063 = scalar_lea.vmem %s5, %s1062
        // Predicated region
        $region53: #{_lambda_.1} parent=35 // pred_check
          %p1064 = pneg %p156
        $region54: #{_lambda_.1} parent=35 // pred_check_branch
          %1066 = sbr.rel (%p1064) target = $region56
        $region55: #{_lambda_.1} parent=35 // pred_region
          _
        $region56: #{_lambda_.1} parent=35 // pred_fallthru
          _
        // Predicated region
        $region57: #{_lambda_.1} parent=35 // pred_check
          %p1067 = pneg %p182
        $region58: #{_lambda_.1} parent=35 // pred_check_branch
          %1069 = sbr.rel (%p1067) target = $region60
        $region59: #{_lambda_.1} parent=35 // pred_region
          _
        $region60: #{_lambda_.1} parent=35 // pred_fallthru
          _
      $region36: #{_lambda_.1} parent=5 // pred_fallthru
        _
      %p1070 = scmp.le.s32.totalorder 2, %s15
      // Predicated region
      $region61: #{_lambda_.1} parent=5 // pred_check
        %p1071 = pneg %p1070
      $region62: #{_lambda_.1} parent=5 // pred_check_branch
        %1073 = sbr.rel (%p1071) target = $region64
      $region63: #{_lambda_.1} parent=5 // pred_region
        %s1074 = ssub.s32 %s15, 2
        // Predicated region
        $region65: #{_lambda_.1} parent=63 // pred_check
          %p1075 = pneg %p162
        $region66: #{_lambda_.1} parent=63 // pred_check_branch
          %1077 = sbr.rel (%p1075) target = $region68
        $region67: #{_lambda_.1} parent=63 // pred_region
          %p1078 = scmp.lt.s32.totalorder %s26, 1
          %s1079 = scalar_select %p1078, %s26, 1
          %s1080 = smul.addr %s1079, 2
          %s1081 = smul.addr %s1080, 8
          %s1082 = scalar_lea.vmem %s4, %s1081
        $region68: #{_lambda_.1} parent=63 // pred_fallthru
          _
        // Predicated region
        $region69: #{_lambda_.1} parent=63 // pred_check
          %p1083 = pneg %p188
        $region70: #{_lambda_.1} parent=63 // pred_check_branch
          %1085 = sbr.rel (%p1083) target = $region72
        $region71: #{_lambda_.1} parent=63 // pred_region
          %p1086 = scmp.lt.s32.totalorder %s26, 1
          %s1087 = scalar_select %p1086, %s26, 1
          %s1088 = smul.addr %s1087, 2
          %s1089 = smul.addr %s1088, 8
          %s1090 = scalar_lea.vmem %s5, %s1089
        $region72: #{_lambda_.1} parent=63 // pred_fallthru
          _
      $region64: #{_lambda_.1} parent=5 // pred_fallthru
        _
    $region6: #{_lambda_.1} parent=1 // loop_footer
      %s19 = sadd.s32 1, %s15
    $region7: #{_lambda_.1} parent=1 // loop_footer_branch
      %14 = sbr.rel target = $region3
    $region8: #{_lambda_.1} parent=1 // loop_exit
      _
    %1091 = vsyncpa [#allocation5], 1
    %s1092 = scalar_lea.sflag [#allocation5], 1
    %1093 = vsyncpa %s1092, 1

</llo_original>
